<compile_context>
chip_gen: v7x
topology: tpu7x:2x2x1
jax: 0.10.0
libtpu: 0.0.40
codegen_flags: <defaults>
</compile_context>

<pallas_src>
import functools

import jax
import jax.numpy as jnp
from jax import lax
from jax.experimental import pallas as pl
from jax.experimental.pallas import tpu as pltpu


def _round_up(x, m):
    return ((x + m - 1) // m) * m


def _yolo_loss_kernel(pred_ref, targ_ref, out_ref, *, C, M,
                      tiles_per_part, total_tiles,
                      lambda_coord, lambda_noobj,
                      mask_rows, skip_dup_tiles):
    tile_m, D = pred_ref.shape
    p = pl.program_id(0)          # row partition (one per TensorCore on v7x)
    t = pl.program_id(1)          # tile within partition (reduction axis)
    idx = p * tiles_per_part + t  # logical tile index

    @pl.when(t == 0)
    def _():
        out_ref[...] = jnp.zeros_like(out_ref)

    def compute():
        pred = pred_ref[...].astype(jnp.float32)        # (tile_m, D)
        targ = targ_ref[...].astype(jnp.float32)

        # ---- channel-major box sub-slab via static slice + XLU transpose ----
        # (no MXU: a [8xD]x[Dxtile_m] one-hot matmul streams the full slab
        # through the MXU at ~3% utilisation; the transpose of the 8-channel
        # sub-slab is far cheaper and exact.)
        n_box = min(8, D - C)                            # >= 5 (x,y,w,h,conf)
        pbox = jnp.transpose(pred[:, C:C + n_box])       # (n_box, tile_m)
        tbox = jnp.transpose(targ[:, C:C + n_box])

        pxy, pwh, pcf = pbox[0:2, :], pbox[2:4, :], pbox[4:5, :]
        txy, twh, tcf = tbox[0:2, :], tbox[2:4, :], tbox[4:5, :]

        obj_row = tcf > 0.0                              # (1, tile_m)
        noobj_row = tcf == 0.0
        tconf_col = targ[:, C + 4:C + 5]                 # (tile_m, 1)
        obj_col = tconf_col > 0.0

        if mask_rows:
            # Only the genuinely ragged last tile has rows >= M; the mask is
            # applied to the small per-row predicates (never to the slab), and
            # where() keeps stale-VMEM NaNs out of the sums.
            limit = M - idx * tile_m                     # scalar
            lane = lax.broadcasted_iota(jnp.int32, (1, tile_m), 1)
            valid_row = lane < limit
            obj_row = jnp.logical_and(obj_row, valid_row)
            noobj_row = jnp.logical_and(noobj_row, valid_row)
            sub = lax.broadcasted_iota(jnp.int32, (tile_m, 1), 0)
            obj_col = jnp.logical_and(obj_col, sub < limit)

        # ---- dense term: class + lambda_coord*(x, y), object cells only ----
        col = lax.broadcasted_iota(jnp.int32, (1, D), 1)
        w_row = jnp.where(col < C, 1.0,
                          jnp.where(col < C + 2, lambda_coord, 0.0))
        d = pred - targ
        d2 = d * d
        dense_sum = jnp.sum(jnp.where(obj_col, d2 * w_row, 0.0))

        # ---- no-object confidence (lane-dense transposed slab) ----
        noobj_sum = jnp.sum(jnp.where(noobj_row, (pcf - tcf) ** 2, 0.0))

        # ---- IoU, object confidence and sqrt(w, h) terms ----
        p_lo = pxy - pwh * 0.5
        p_hi = pxy + pwh * 0.5
        t_lo = txy - twh * 0.5
        t_hi = txy + twh * 0.5
        dd = jnp.maximum(jnp.minimum(p_hi, t_hi) - jnp.maximum(p_lo, t_lo), 0.0)
        inter = dd[0:1, :] * dd[1:2, :]                  # (1, tile_m)
        union = (pwh[0:1, :] * pwh[1:2, :] + twh[0:1, :] * twh[1:2, :]
                 - inter + 1e-6)
        # approx=False keeps full accuracy (approx=True would perturb IoU at
        # the ~1e-3 level, borderline against the test tolerance).
        iou = inter * pl.reciprocal(union, approx=False)
        obj_conf_sum = jnp.sum(jnp.where(obj_row, (pcf - iou) ** 2, 0.0))

        sqd = (jnp.sqrt(jnp.maximum(pwh, 1e-6))
               - jnp.sqrt(jnp.maximum(twh, 1e-6))) ** 2  # (2, tile_m)
        wh_sum = jnp.sum(jnp.where(obj_row, sqd, 0.0))

        tile_sum = (dense_sum + obj_conf_sum
                    + lambda_coord * wh_sum + lambda_noobj * noobj_sum)
        out_ref[...] += tile_sum

    if skip_dup_tiles:
        # Clamped duplicate tiles (odd tile count with 2 partitions): skip the
        # whole body instead of computing and masking it.
        pl.when(idx < total_tiles)(compute)
    else:
        compute()


def yolo_loss(predictions, target, *, S=7, B=2, C=20,
              lambda_coord=5.0, lambda_noobj=0.5, tile_rows=None):
    """predictions, target: [N, S, S, D] channels-last with D >= C + 5.

    Only the first predicted box (channels C..C+4) is used, mirroring the
    PyTorch module (it never selects a responsible box among the B boxes).
    """
    del S, B  # layout implied by the array shapes; only the first box is used
    assert predictions.shape == target.shape
    N = predictions.shape[0]
    D = predictions.shape[-1]
    assert D >= C + 5, "need at least C + 5 channels"
    M = 1
    for dim in predictions.shape[:-1]:
        M *= dim

    # No wrapper-side dtype cast (that would be an extra HBM pass); the kernel
    # upcasts tiles to f32 inside VMEM.
    pred2d = predictions.reshape(M, D)
    targ2d = target.reshape(M, D)

    kind = ""
    try:
        kind = jax.devices()[0].device_kind.lower()
    except Exception:  # pragma: no cover - device query is best-effort only
        pass
    is_v6 = "v6" in kind
    multi_tc = ("v7" in kind) or ("tpu7" in kind)        # 2 TCs per chip (v7x)

    # ---- tiling: ~1 MiB input blocks (2 MiB on v6e), bounded by VMEM on
    # every generation; double-buffered by the BlockSpec pipeline. ----
    itemsize = jnp.dtype(predictions.dtype).itemsize
    if tile_rows is None:
        block_budget = (2 if is_v6 else 1) * 1024 * 1024
        row_cap = 16384 if is_v6 else 8192
        budget_rows = block_budget // max(1, D * itemsize)
        tile_rows = min(row_cap, max(8, (budget_rows // 8) * 8))
    tile_m = min(_round_up(tile_rows, 8), _round_up(M, 8))

    total_tiles = pl.cdiv(M, tile_m)
    # 2-way partition only where there are two TensorCores to use it.
    num_parts = 2 if (multi_tc and total_tiles >= 2) else 1
    tiles_per_part = pl.cdiv(total_tiles, num_parts)
    skip_dup_tiles = (num_parts * tiles_per_part) != total_tiles
    mask_rows = (total_tiles * tile_m) != M

    def row_block(p, t):
        idx = p * tiles_per_part + t
        # Clamp out-of-range duplicate tiles (odd tile counts with 2 parts);
        # the kernel skips them entirely via pl.when.
        return (jnp.minimum(idx, total_tiles - 1), 0)

    kernel = functools.partial(
        _yolo_loss_kernel, C=C, M=M,
        tiles_per_part=tiles_per_part, total_tiles=total_tiles,
        lambda_coord=float(lambda_coord), lambda_noobj=float(lambda_noobj),
        mask_rows=mask_rows, skip_dup_tiles=skip_dup_tiles)

    vmem_limit = (64 if is_v6 else 32) * 1024 * 1024

    partials = pl.pallas_call(
        kernel,
        out_shape=jax.ShapeDtypeStruct((num_parts, 1, 1), jnp.float32),
        grid_spec=pltpu.PrefetchScalarGridSpec(
            num_scalar_prefetch=0,
            grid=(num_parts, tiles_per_part),
            in_specs=[pl.BlockSpec((tile_m, D), row_block),
                      pl.BlockSpec((tile_m, D), row_block)],
            out_specs=pl.BlockSpec((1, 1, 1), lambda p, t: (p, 0, 0)),
        ),
        compiler_params=pltpu.CompilerParams(
            dimension_semantics=("parallel", "arbitrary"),
            vmem_limit_bytes=vmem_limit),
    )(pred2d, targ2d)

    return jnp.sum(partials) / N


def _reference_loss(predictions, target, *, C, lambda_coord, lambda_noobj):
    """Pure-JAX reference mirroring the PyTorch module's semantics."""
    N = predictions.shape[0]
    pc = predictions[..., :C]
    pb = predictions[..., C:C + 4]
    pconf = predictions[..., C + 4]
    tc = target[..., :C]
    tb = target[..., C:C + 4]
    tconf = target[..., C + 4]

    obj = tconf > 0
    noobj = tconf == 0

    b1x1 = pb[..., 0] - pb[..., 2] / 2; b1y1 = pb[..., 1] - pb[..., 3] / 2
    b1x2 = pb[..., 0] + pb[..., 2] / 2; b1y2 = pb[..., 1] + pb[..., 3] / 2
    b2x1 = tb[..., 0] - tb[..., 2] / 2; b2y1 = tb[..., 1] - tb[..., 3] / 2
    b2x2 = tb[..., 0] + tb[..., 2] / 2; b2y2 = tb[..., 1] + tb[..., 3] / 2
    inter = (jnp.maximum(jnp.minimum(b1x2, b2x2) - jnp.maximum(b1x1, b2x1), 0.0)
             * jnp.maximum(jnp.minimum(b1y2, b2y2) - jnp.maximum(b1y1, b2y1), 0.0))
    union = ((b1x2 - b1x1) * (b1y2 - b1y1) + (b2x2 - b2x1) * (b2y2 - b2y1)
             - inter + 1e-6)
    iou = inter / union

    def msum(mask, x):
        return jnp.sum(jnp.where(mask, x, 0.0))

    box = (msum(obj, (pb[..., 0] - tb[..., 0]) ** 2 + (pb[..., 1] - tb[..., 1]) ** 2)
           + msum(obj, (jnp.sqrt(jnp.maximum(pb[..., 2], 1e-6))
                        - jnp.sqrt(jnp.maximum(tb[..., 2], 1e-6))) ** 2
                       + (jnp.sqrt(jnp.maximum(pb[..., 3], 1e-6))
                          - jnp.sqrt(jnp.maximum(tb[..., 3], 1e-6))) ** 2))
    objl = msum(obj, (pconf - iou) ** 2)
    noobjl = msum(noobj, (pconf - tconf) ** 2)
    classl = msum(obj[..., None], (pc - tc) ** 2)
    return (lambda_coord * box + objl + lambda_noobj * noobjl + classl) / N


if __name__ == "__main__":
    def make_inputs(key, Nb, S, C, B):
        D = C + 5 * B
        k1, k2, k3, k4 = jax.random.split(key, 4)
        preds = jax.random.normal(k1, (Nb, S, S, D), dtype=jnp.float32)
        t_cls = jax.random.uniform(k2, (Nb, S, S, C), dtype=jnp.float32)
        t_box = jax.random.uniform(k3, (Nb, S, S, 4), dtype=jnp.float32)
        t_cnf = (jax.random.uniform(k4, (Nb, S, S, 1)) > 0.5).astype(jnp.float32)
        t_rest = jnp.zeros((Nb, S, S, D - C - 5), dtype=jnp.float32)
        return preds, jnp.concatenate([t_cls, t_box, t_cnf, t_rest], axis=-1)

    key = jax.random.PRNGKey(0)
    k_a, k_b = jax.random.split(key)

    # Case 1: small single-tile config (N=2, S=4, C=8, B=2 -> D=18, M=32).
    preds, target = make_inputs(k_a, 2, 4, 8, 2)
    loss = yolo_loss(preds, target, S=4, B=2, C=8,
                     lambda_coord=5.0, lambda_noobj=0.5)
    loss = jax.block_until_ready(loss)
    ref = _reference_loss(preds, target, C=8, lambda_coord=5.0, lambda_noobj=0.5)
    assert jnp.allclose(loss, ref, rtol=2e-3, atol=1e-3), (loss, ref)

    # Case 2: forces a multi-tile reduction grid and ragged-row masking
    # (N=3, S=5, C=6, B=2 -> D=16, M=75, 16-row tiles).
    preds2, target2 = make_inputs(k_b, 3, 5, 6, 2)
    loss2 = yolo_loss(preds2, target2, S=5, B=2, C=6,
                      lambda_coord=5.0, lambda_noobj=0.5, tile_rows=16)
    loss2 = jax.block_until_ready(loss2)
    ref2 = _reference_loss(preds2, target2, C=6, lambda_coord=5.0, lambda_noobj=0.5)
    assert jnp.allclose(loss2, ref2, rtol=2e-3, atol=1e-3), (loss2, ref2)

    print("KERNEL_OK")
</pallas_src>

<mosaic_0001>
module attributes {stable_mosaic.version = 11 : i64} {
  func.func @_yolo_loss_kernel(%arg0: i32, %arg1: i32, %arg2: memref<32x18xf32, #tpu.memory_space<vmem>>, %arg3: memref<32x18xf32, #tpu.memory_space<vmem>>, %arg4: memref<1x1x1xf32, #tpu.memory_space<vmem>>) attributes {dimension_semantics = [#tpu.dimension_semantics<parallel>, #tpu.dimension_semantics<arbitrary>], iteration_bounds = array<i64: 1, 1>, scalar_prefetch = 0 : i64, scratch_operands = 0 : i64, tpu.core_type = #tpu.core_type<tc>, window_params = [{transform_indices = @transform_0, window_bounds = array<i64: 32, 18>}, {transform_indices = @transform_1, window_bounds = array<i64: 32, 18>}, {transform_indices = @transform_2, window_bounds = array<i64: 1, 1, 1>}]} {
    %c0_i32 = arith.constant 0 : i32
    %0 = arith.cmpi eq, %arg1, %c0_i32 : i32
    %1 = arith.extui %0 : i1 to i32
    %c0_i32_0 = arith.constant 0 : i32
    %2 = arith.cmpi ne, %1, %c0_i32_0 : i32
    scf.if %2 {
      %cst_33 = arith.constant 0.000000e+00 : f32
      %117 = vector.broadcast %cst_33 : f32 to vector<1x1x1xf32>
      %c0_34 = arith.constant 0 : index
      %c0_35 = arith.constant 0 : index
      %c0_36 = arith.constant 0 : index
      %118 = vector.load %arg4[%c0_34, %c0_35, %c0_36] : memref<1x1x1xf32, #tpu.memory_space<vmem>>, vector<1x1x1xf32>
      tpu.vector_store %arg4[%c0_34, %c0_35, %c0_36], %117 {strides = array<i32>} : memref<1x1x1xf32, #tpu.memory_space<vmem>>, vector<1x1x1xf32>,
    } else {
    }
    %c0 = arith.constant 0 : index
    %c0_1 = arith.constant 0 : index
    %3 = vector.load %arg2[%c0, %c0_1] : memref<32x18xf32, #tpu.memory_space<vmem>>, vector<32x18xf32>
    %c0_2 = arith.constant 0 : index
    %c0_3 = arith.constant 0 : index
    %4 = vector.load %arg3[%c0_2, %c0_3] : memref<32x18xf32, #tpu.memory_space<vmem>>, vector<32x18xf32>
    %5 = vector.extract_strided_slice %3 {offsets = [0, 8], sizes = [32, 8], strides = [1, 1]} : vector<32x18xf32> to vector<32x8xf32>
    %6 = tpu.transpose %5, [1, 0] : vector<32x8xf32> -> vector<8x32xf32>
    %7 = vector.extract_strided_slice %4 {offsets = [0, 8], sizes = [32, 8], strides = [1, 1]} : vector<32x18xf32> to vector<32x8xf32>
    %8 = tpu.transpose %7, [1, 0] : vector<32x8xf32> -> vector<8x32xf32>
    %9 = vector.extract_strided_slice %6 {offsets = [0, 0], sizes = [2, 32], strides = [1, 1]} : vector<8x32xf32> to vector<2x32xf32>
    %10 = vector.extract_strided_slice %6 {offsets = [2, 0], sizes = [2, 32], strides = [1, 1]} : vector<8x32xf32> to vector<2x32xf32>
    %11 = vector.extract_strided_slice %6 {offsets = [4, 0], sizes = [1, 32], strides = [1, 1]} : vector<8x32xf32> to vector<1x32xf32>
    %12 = vector.extract_strided_slice %8 {offsets = [0, 0], sizes = [2, 32], strides = [1, 1]} : vector<8x32xf32> to vector<2x32xf32>
    %13 = vector.extract_strided_slice %8 {offsets = [2, 0], sizes = [2, 32], strides = [1, 1]} : vector<8x32xf32> to vector<2x32xf32>
    %14 = vector.extract_strided_slice %8 {offsets = [4, 0], sizes = [1, 32], strides = [1, 1]} : vector<8x32xf32> to vector<1x32xf32>
    %cst = arith.constant 0.000000e+00 : f32
    %15 = vector.broadcast %cst : f32 to vector<1x32xf32>
    %16 = arith.cmpf ogt, %14, %15 : vector<1x32xf32>
    %cst_4 = arith.constant 0.000000e+00 : f32
    %17 = vector.broadcast %cst_4 : f32 to vector<1x32xf32>
    %18 = arith.cmpf oeq, %14, %17 : vector<1x32xf32>
    %19 = vector.extract_strided_slice %4 {offsets = [0, 12], sizes = [32, 1], strides = [1, 1]} : vector<32x18xf32> to vector<32x1xf32>
    %cst_5 = arith.constant 0.000000e+00 : f32
    %20 = vector.broadcast %cst_5 : f32 to vector<32x1xf32>
    %21 = arith.cmpf ogt, %19, %20 : vector<32x1xf32>
    %22 = tpu.iota {dimensions = array<i32: 1>} : vector<1x18xi32>
    %c8_i32 = arith.constant 8 : i32
    %23 = vector.broadcast %c8_i32 : i32 to vector<1x18xi32>
    %24 = arith.cmpi slt, %22, %23 : vector<1x18xi32>
    %c10_i32 = arith.constant 10 : i32
    %25 = vector.broadcast %c10_i32 : i32 to vector<1x18xi32>
    %26 = arith.cmpi slt, %22, %25 : vector<1x18xi32>
    %cst_6 = arith.constant 5.000000e+00 : f32
    %cst_7 = arith.constant 0.000000e+00 : f32
    %27 = vector.broadcast %cst_6 : f32 to vector<1x18xf32>
    %28 = vector.broadcast %cst_7 : f32 to vector<1x18xf32>
    %29 = arith.select %26, %27, %28 : vector<1x18xi1>, vector<1x18xf32>
    %cst_8 = arith.constant 1.000000e+00 : f32
    %30 = vector.broadcast %cst_8 : f32 to vector<1x18xf32>
    %31 = arith.select %24, %30, %29 : vector<1x18xi1>, vector<1x18xf32>
    %32 = arith.subf %3, %4 : vector<32x18xf32>
    %33 = arith.mulf %32, %32 : vector<32x18xf32>
    %34 = vector.broadcast %31 : vector<1x18xf32> to vector<32x18xf32>
    %35 = arith.mulf %33, %34 : vector<32x18xf32>
    %cst_9 = arith.constant 0.000000e+00 : f32
    %36 = vector.shape_cast %21 : vector<32x1xi1> to vector<32x1xi1>
    %37 = vector.broadcast %36 : vector<32x1xi1> to vector<32x18xi1>
    %38 = vector.broadcast %cst_9 : f32 to vector<32x18xf32>
    %39 = arith.select %37, %35, %38 : vector<32x18xi1>, vector<32x18xf32>
    %40 = vector.shape_cast %39 : vector<32x18xf32> to vector<1x32x18xf32>
    %cst_10 = arith.constant dense<0.000000e+00> : vector<1xf32>
    %41 = vector.multi_reduction <add>, %40, %cst_10 [1, 2] : vector<1x32x18xf32> to vector<1xf32>
    %42 = vector.shape_cast %41 : vector<1xf32> to vector<1x1x1xf32>
    %43 = vector.extract %42[0, 0, 0] : f32 from vector<1x1x1xf32>
    %44 = arith.subf %11, %14 : vector<1x32xf32>
    %45 = arith.mulf %44, %44 : vector<1x32xf32>
    %cst_11 = arith.constant 0.000000e+00 : f32
    %46 = vector.broadcast %cst_11 : f32 to vector<1x32xf32>
    %47 = arith.select %18, %45, %46 : vector<1x32xi1>, vector<1x32xf32>
    %48 = vector.shape_cast %47 : vector<1x32xf32> to vector<1x1x32xf32>
    %cst_12 = arith.constant dense<0.000000e+00> : vector<1xf32>
    %49 = vector.multi_reduction <add>, %48, %cst_12 [1, 2] : vector<1x1x32xf32> to vector<1xf32>
    %50 = vector.shape_cast %49 : vector<1xf32> to vector<1x1x1xf32>
    %51 = vector.extract %50[0, 0, 0] : f32 from vector<1x1x1xf32>
    %cst_13 = arith.constant 5.000000e-01 : f32
    %52 = vector.broadcast %cst_13 : f32 to vector<2x32xf32>
    %53 = arith.mulf %10, %52 : vector<2x32xf32>
    %54 = arith.subf %9, %53 : vector<2x32xf32>
    %cst_14 = arith.constant 5.000000e-01 : f32
    %55 = vector.broadcast %cst_14 : f32 to vector<2x32xf32>
    %56 = arith.mulf %10, %55 : vector<2x32xf32>
    %57 = arith.addf %9, %56 : vector<2x32xf32>
    %cst_15 = arith.constant 5.000000e-01 : f32
    %58 = vector.broadcast %cst_15 : f32 to vector<2x32xf32>
    %59 = arith.mulf %13, %58 : vector<2x32xf32>
    %60 = arith.subf %12, %59 : vector<2x32xf32>
    %cst_16 = arith.constant 5.000000e-01 : f32
    %61 = vector.broadcast %cst_16 : f32 to vector<2x32xf32>
    %62 = arith.mulf %13, %61 : vector<2x32xf32>
    %63 = arith.addf %12, %62 : vector<2x32xf32>
    %64 = arith.minimumf %57, %63 : vector<2x32xf32>
    %65 = arith.maximumf %54, %60 : vector<2x32xf32>
    %66 = arith.subf %64, %65 : vector<2x32xf32>
    %cst_17 = arith.constant 0.000000e+00 : f32
    %67 = vector.broadcast %cst_17 : f32 to vector<2x32xf32>
    %68 = arith.maximumf %66, %67 : vector<2x32xf32>
    %69 = vector.extract_strided_slice %68 {offsets = [0, 0], sizes = [1, 32], strides = [1, 1]} : vector<2x32xf32> to vector<1x32xf32>
    %70 = vector.extract_strided_slice %68 {offsets = [1, 0], sizes = [1, 32], strides = [1, 1]} : vector<2x32xf32> to vector<1x32xf32>
    %71 = arith.mulf %69, %70 : vector<1x32xf32>
    %72 = vector.extract_strided_slice %10 {offsets = [0, 0], sizes = [1, 32], strides = [1, 1]} : vector<2x32xf32> to vector<1x32xf32>
    %73 = vector.extract_strided_slice %10 {offsets = [1, 0], sizes = [1, 32], strides = [1, 1]} : vector<2x32xf32> to vector<1x32xf32>
    %74 = arith.mulf %72, %73 : vector<1x32xf32>
    %75 = vector.extract_strided_slice %13 {offsets = [0, 0], sizes = [1, 32], strides = [1, 1]} : vector<2x32xf32> to vector<1x32xf32>
    %76 = vector.extract_strided_slice %13 {offsets = [1, 0], sizes = [1, 32], strides = [1, 1]} : vector<2x32xf32> to vector<1x32xf32>
    %77 = arith.mulf %75, %76 : vector<1x32xf32>
    %78 = arith.addf %74, %77 : vector<1x32xf32>
    %79 = arith.subf %78, %71 : vector<1x32xf32>
    %cst_18 = arith.constant 9.99999997E-7 : f32
    %80 = vector.broadcast %cst_18 : f32 to vector<1x32xf32>
    %81 = arith.addf %79, %80 : vector<1x32xf32>
    %82 = tpu.reciprocal %81 : vector<1x32xf32> -> vector<1x32xf32>
    %83 = arith.mulf %71, %82 : vector<1x32xf32>
    %84 = arith.subf %11, %83 : vector<1x32xf32>
    %85 = arith.mulf %84, %84 : vector<1x32xf32>
    %cst_19 = arith.constant 0.000000e+00 : f32
    %86 = vector.broadcast %cst_19 : f32 to vector<1x32xf32>
    %87 = arith.select %16, %85, %86 : vector<1x32xi1>, vector<1x32xf32>
    %88 = vector.shape_cast %87 : vector<1x32xf32> to vector<1x1x32xf32>
    %cst_20 = arith.constant dense<0.000000e+00> : vector<1xf32>
    %89 = vector.multi_reduction <add>, %88, %cst_20 [1, 2] : vector<1x1x32xf32> to vector<1xf32>
    %90 = vector.shape_cast %89 : vector<1xf32> to vector<1x1x1xf32>
    %91 = vector.extract %90[0, 0, 0] : f32 from vector<1x1x1xf32>
    %cst_21 = arith.constant 9.99999997E-7 : f32
    %92 = vector.broadcast %cst_21 : f32 to vector<2x32xf32>
    %93 = arith.maximumf %10, %92 : vector<2x32xf32>
    %94 = math.sqrt %93 : vector<2x32xf32>
    %cst_22 = arith.constant 9.99999997E-7 : f32
    %95 = vector.broadcast %cst_22 : f32 to vector<2x32xf32>
    %96 = arith.maximumf %13, %95 : vector<2x32xf32>
    %97 = math.sqrt %96 : vector<2x32xf32>
    %98 = arith.subf %94, %97 : vector<2x32xf32>
    %99 = arith.mulf %98, %98 : vector<2x32xf32>
    %cst_23 = arith.constant 0.000000e+00 : f32
    %100 = vector.shape_cast %16 : vector<1x32xi1> to vector<1x32xi1>
    %101 = vector.broadcast %100 : vector<1x32xi1> to vector<2x32xi1>
    %102 = vector.broadcast %cst_23 : f32 to vector<2x32xf32>
    %103 = arith.select %101, %99, %102 : vector<2x32xi1>, vector<2x32xf32>
    %104 = vector.shape_cast %103 : vector<2x32xf32> to vector<1x2x32xf32>
    %cst_24 = arith.constant dense<0.000000e+00> : vector<1xf32>
    %105 = vector.multi_reduction <add>, %104, %cst_24 [1, 2] : vector<1x2x32xf32> to vector<1xf32>
    %106 = vector.shape_cast %105 : vector<1xf32> to vector<1x1x1xf32>
    %107 = vector.extract %106[0, 0, 0] : f32 from vector<1x1x1xf32>
    %108 = arith.addf %43, %91 : f32
    %cst_25 = arith.constant 5.000000e+00 : f32
    %109 = arith.mulf %cst_25, %107 : f32
    %110 = arith.addf %108, %109 : f32
    %cst_26 = arith.constant 5.000000e-01 : f32
    %111 = arith.mulf %cst_26, %51 : f32
    %112 = arith.addf %110, %111 : f32
    %c0_27 = arith.constant 0 : index
    %c0_28 = arith.constant 0 : index
    %c0_29 = arith.constant 0 : index
    %113 = vector.load %arg4[%c0_27, %c0_28, %c0_29] : memref<1x1x1xf32, #tpu.memory_space<vmem>>, vector<1x1x1xf32>
    %114 = vector.broadcast %112 : f32 to vector<1x1x1xf32>
    %115 = arith.addf %113, %114 : vector<1x1x1xf32>
    %c0_30 = arith.constant 0 : index
    %c0_31 = arith.constant 0 : index
    %c0_32 = arith.constant 0 : index
    %116 = vector.load %arg4[%c0_30, %c0_31, %c0_32] : memref<1x1x1xf32, #tpu.memory_space<vmem>>, vector<1x1x1xf32>
    tpu.vector_store %arg4[%c0_30, %c0_31, %c0_32], %115 {strides = array<i32>} : memref<1x1x1xf32, #tpu.memory_space<vmem>>, vector<1x1x1xf32>,
    return
  }
  func.func @transform_0(%arg0: i32, %arg1: i32) -> (i32, i32) {
    %c1_i32 = arith.constant 1 : i32
    %0 = arith.muli %arg0, %c1_i32 : i32
    %1 = arith.addi %0, %arg1 : i32
    %c0_i32 = arith.constant 0 : i32
    %2 = arith.minsi %1, %c0_i32 : i32
    %c0_i32_0 = arith.constant 0 : i32
    %c0_i32_1 = arith.constant 0 : i32
    return %2, %c0_i32_0 : i32, i32
  }
  func.func @transform_1(%arg0: i32, %arg1: i32) -> (i32, i32) {
    %c1_i32 = arith.constant 1 : i32
    %0 = arith.muli %arg0, %c1_i32 : i32
    %1 = arith.addi %0, %arg1 : i32
    %c0_i32 = arith.constant 0 : i32
    %2 = arith.minsi %1, %c0_i32 : i32
    %c0_i32_0 = arith.constant 0 : i32
    %c0_i32_1 = arith.constant 0 : i32
    return %2, %c0_i32_0 : i32, i32
  }
  func.func @transform_2(%arg0: i32, %arg1: i32) -> (i32, i32, i32) {
    %c0_i32 = arith.constant 0 : i32
    %c0_i32_0 = arith.constant 0 : i32
    %c0_i32_1 = arith.constant 0 : i32
    return %arg0, %c0_i32, %c0_i32_0 : i32, i32, i32
  }
}

</mosaic_0001>

<llo_original>
// kernel: tpu_custom_call.1
$region0: #{tpu_custom_call.1}
  #allocation0 [shape = 'u32[]', space=smem, size = 0x4, offset = 0x4, fixed_abs, tag = 'smem constant byte address 0x4 - core index']
  #allocation1 [shape = 'u32[144,128]{1,0:T(1,128)}', space=vmem, size = 0x12000, scoped, tag = 'internal scratch']
  %s0 = inlined_call_operand.vmem [shape: f32[32,18], index: 0, kind: input, shape index: {}]
  %s1 = inlined_call_operand.vmem [shape: f32[32,18], index: 1, kind: input, shape index: {}]
  %s2 = inlined_call_operand.hbm [shape: f32[1,1,1], index: 2, kind: output, shape index: {}]
  %s3 = sld [smem:[#allocation0]]
  $region22: #{tpu_custom_call.1} parent=0
    _
  %s5 = ssub.s32 1, %s3
  %s6 = scalar_select 0, %s5, %s3
  $region1: #{tpu_custom_call.1} parent=0
    #allocation2 [shape = 'u8[512]{0}', space=vmem, size = 0x400, scoped, tag = 'output window, operand 0, single buffered']
    #allocation3 [shape = 's32[1]{0}', space=sflag, size = 0x4, scoped, tag = 'scoped memory for tpu_custom_call.1']
    %7 = vsyncpa [#allocation3], 0
    // Predicated region
    $region2: #{tpu_custom_call.1} parent=1 // pred_check
      _
    $region3: #{tpu_custom_call.1} parent=1 // pred_check_branch
      %9 = sbr.rel (0) target = $region5
    $region4: #{tpu_custom_call.1} parent=1 // pred_region
      %s10 = sadd.s32 0, 0
      %p11 = scmp.lt.s32.totalorder %s10, 0
      %s12 = scalar_select %p11, %s10, 0
      %s13 = smul.u32 4, %s12
      %p14 = scmp.lt.s32.totalorder %s13, 3
      %s15 = scalar_select %p14, %s13, 3
      %s16 = smul.addr %s15, 8
      %s17 = scalar_lea.vmem %s0, %s16
      %s18 = sadd.s32 0, 0
      %p19 = scmp.lt.s32.totalorder %s18, 0
      %s20 = scalar_select %p19, %s18, 0
      %s21 = smul.u32 4, %s20
    $region5: #{tpu_custom_call.1} parent=1 // pred_fallthru
      _
    // Predicated region
    $region6: #{tpu_custom_call.1} parent=1 // pred_check
      _
    $region7: #{tpu_custom_call.1} parent=1 // pred_check_branch
      %23 = sbr.rel (0) target = $region9
    $region8: #{tpu_custom_call.1} parent=1 // pred_region
      %s24 = sadd.s32 0, 0
      %p25 = scmp.lt.s32.totalorder %s24, 0
      %s26 = scalar_select %p25, %s24, 0
      %s27 = smul.u32 4, %s26
      %p28 = scmp.lt.s32.totalorder %s27, 3
      %s29 = scalar_select %p28, %s27, 3
      %s30 = smul.addr %s29, 8
      %s31 = scalar_lea.vmem %s1, %s30
      %s32 = sadd.s32 0, 0
      %p33 = scmp.lt.s32.totalorder %s32, 0
      %s34 = scalar_select %p33, %s32, 0
      %s35 = smul.u32 4, %s34
    $region9: #{tpu_custom_call.1} parent=1 // pred_fallthru
      _
    %s36 = sadd.s32 0, 0
    %p37 = scmp.lt.s32.totalorder %s36, 0
    %s38 = scalar_select %p37, %s36, 0
    %s39 = smul.u32 4, %s38
    %p40 = scmp.lt.s32.totalorder %s39, 3
    %s41 = scalar_select %p40, %s39, 3
    %s42 = smul.addr %s41, 8
    %s43 = scalar_lea.vmem %s0, %s42
    %s44 = sadd.s32 0, 0
    %p45 = scmp.lt.s32.totalorder %s44, 0
    %s46 = scalar_select %p45, %s44, 0
    %s47 = smul.u32 4, %s46
    %p48 = scmp.lt.s32.totalorder %s47, 3
    %s49 = scalar_select %p48, %s47, 3
    %s50 = smul.addr %s49, 8
    %s51 = scalar_lea.vmem %s1, %s50
    %s52 = sadd.s32 0, 0
    %p53 = scmp.lt.s32.totalorder %s52, 0
    %s54 = scalar_select %p53, %s52, 0
    %s55 = smul.u32 4, %s54
    %p56 = scmp.lt.s32.totalorder %s55, 3
    %s57 = scalar_select %p56, %s55, 3
    %s58 = smul.addr %s57, 8
    %s59 = scalar_lea.vmem %s0, %s58
    %s60 = sadd.s32 0, 0
    %p61 = scmp.lt.s32.totalorder %s60, 0
    %s62 = scalar_select %p61, %s60, 0
    %s63 = smul.u32 4, %s62
    %s64 = sadd.s32 0, 0
    %p65 = scmp.lt.s32.totalorder %s64, 0
    %s66 = scalar_select %p65, %s64, 0
    %s67 = smul.u32 4, %s66
    %p68 = scmp.lt.s32.totalorder %s67, 3
    %s69 = scalar_select %p68, %s67, 3
    %s70 = smul.addr %s69, 8
    %s71 = scalar_lea.vmem %s1, %s70
    %s72 = sadd.s32 0, 0
    %p73 = scmp.lt.s32.totalorder %s72, 0
    %s74 = scalar_select %p73, %s72, 0
    %s75 = smul.u32 4, %s74
    %p76 = scmp.eq.s32.totalorder 0, 0
    // Predicated region
    $region10: #{tpu_custom_call.1} parent=1 // pred_check
      %p77 = pneg %p76
    $region11: #{tpu_custom_call.1} parent=1 // pred_check_branch
      %79 = sbr.rel (%p77) target = $region13
    $region12: #{tpu_custom_call.1} parent=1 // pred_region
      %vm80 = vcmask 0
      %81 = vst.msk [vmem:[#allocation2] sm:$0x1] %vm80, 0.0
    $region13: #{tpu_custom_call.1} parent=1 // pred_fallthru
      _
    %v82 = vld [vmem:[%s59] sm:$0xff]
    %v83 = vld [vmem:[%s59 + $0x8] sm:$0xff]
    %v84 = vld [vmem:[%s59 + $0x10] sm:$0xff]
    %v85 = vld [vmem:[%s59 + $0x18] sm:$0xff]
    %v86 = vld [vmem:[%s71] sm:$0xff]
    %v87 = vld [vmem:[%s71 + $0x8] sm:$0xff]
    %v88 = vld [vmem:[%s71 + $0x10] sm:$0xff]
    %v89 = vld [vmem:[%s71 + $0x18] sm:$0xff]
    %94 = vrot.lane.b32.xlu0 %v82, 120
    %v95 = vpop.permute.xlu0 %94
    %96 = vrot.lane.b32.xlu0 %v83, 120
    %v97 = vpop.permute.xlu0 %96
    %98 = vrot.lane.b32.xlu0 %v84, 120
    %v99 = vpop.permute.xlu0 %98
    %100 = vrot.lane.b32.xlu0 %v85, 120
    %v101 = vpop.permute.xlu0 %100
    %106 = vxpose.xlu0.b32.start [1/16] %v95, 128
    %107 = vxpose.xlu0.b32.cont [2/16] %v97, 128
    %108 = vxpose.xlu0.b32.cont [3/16] %v99, 128
    %109 = vxpose.xlu0.b32.cont [4/16] %v101, 128
    %110 = vxpose.xlu0.b32.cont [5/16] 0.0, 128
    %111 = vxpose.xlu0.b32.cont [6/16] 0.0, 128
    %112 = vxpose.xlu0.b32.cont [7/16] 0.0, 128
    %113 = vxpose.xlu0.b32.cont [8/16] 0.0, 128
    %114 = vxpose.xlu0.b32.cont [9/16] 0.0, 128
    %115 = vxpose.xlu0.b32.cont [10/16] 0.0, 128
    %116 = vxpose.xlu0.b32.cont [11/16] 0.0, 128
    %117 = vxpose.xlu0.b32.cont [12/16] 0.0, 128
    %118 = vxpose.xlu0.b32.cont [13/16] 0.0, 128
    %119 = vxpose.xlu0.b32.cont [14/16] 0.0, 128
    %120 = vxpose.xlu0.b32.cont [15/16] 0.0, 128
    %121 = vxpose.xlu0.b32.end [16/16] 0.0, 128
    %v122 = vpop.trf.xlu0
    %v123 = vpop.trf.xlu0
    %v124 = vpop.trf.xlu0
    %v125 = vpop.trf.xlu0
    %v126 = vpop.trf.xlu0
    %v127 = vpop.trf.xlu0
    %v128 = vpop.trf.xlu0
    %v129 = vpop.trf.xlu0
    %v130 = vpop.trf.xlu0
    %v131 = vpop.trf.xlu0
    %v132 = vpop.trf.xlu0
    %v133 = vpop.trf.xlu0
    %v134 = vpop.trf.xlu0
    %v135 = vpop.trf.xlu0
    %v136 = vpop.trf.xlu0
    %v137 = vpop.trf.xlu0
    %142 = vrot.lane.b32.xlu0 %v86, 120
    %v143 = vpop.permute.xlu0 %142
    %144 = vrot.lane.b32.xlu0 %v87, 120
    %v145 = vpop.permute.xlu0 %144
    %146 = vrot.lane.b32.xlu0 %v88, 120
    %v147 = vpop.permute.xlu0 %146
    %148 = vrot.lane.b32.xlu0 %v89, 120
    %v149 = vpop.permute.xlu0 %148
    %154 = vxpose.xlu0.b32.start [1/16] %v143, 128
    %155 = vxpose.xlu0.b32.cont [2/16] %v145, 128
    %156 = vxpose.xlu0.b32.cont [3/16] %v147, 128
    %157 = vxpose.xlu0.b32.cont [4/16] %v149, 128
    %158 = vxpose.xlu0.b32.cont [5/16] 0.0, 128
    %159 = vxpose.xlu0.b32.cont [6/16] 0.0, 128
    %160 = vxpose.xlu0.b32.cont [7/16] 0.0, 128
    %161 = vxpose.xlu0.b32.cont [8/16] 0.0, 128
    %162 = vxpose.xlu0.b32.cont [9/16] 0.0, 128
    %163 = vxpose.xlu0.b32.cont [10/16] 0.0, 128
    %164 = vxpose.xlu0.b32.cont [11/16] 0.0, 128
    %165 = vxpose.xlu0.b32.cont [12/16] 0.0, 128
    %166 = vxpose.xlu0.b32.cont [13/16] 0.0, 128
    %167 = vxpose.xlu0.b32.cont [14/16] 0.0, 128
    %168 = vxpose.xlu0.b32.cont [15/16] 0.0, 128
    %169 = vxpose.xlu0.b32.end [16/16] 0.0, 128
    %v170 = vpop.trf.xlu0
    %v171 = vpop.trf.xlu0
    %v172 = vpop.trf.xlu0
    %v173 = vpop.trf.xlu0
    %v174 = vpop.trf.xlu0
    %v175 = vpop.trf.xlu0
    %v176 = vpop.trf.xlu0
    %v177 = vpop.trf.xlu0
    %v178 = vpop.trf.xlu0
    %v179 = vpop.trf.xlu0
    %v180 = vpop.trf.xlu0
    %v181 = vpop.trf.xlu0
    %v182 = vpop.trf.xlu0
    %v183 = vpop.trf.xlu0
    %v184 = vpop.trf.xlu0
    %v185 = vpop.trf.xlu0
    %vm186 = vcmp.gt.f32.partialorder %v170, 0.0
    %vm187 = vcmp.eq.f32.partialorder %v170, 0.0
    %vm188 = vcmp.gt.f32.partialorder %v86, 0.0
    %vm189 = vcmp.gt.f32.partialorder %v87, 0.0
    %vm190 = vcmp.gt.f32.partialorder %v88, 0.0
    %vm191 = vcmp.gt.f32.partialorder %v89, 0.0
    %v192 = vlaneseq
    %v193 = vand.u32 %v192, 127
    %vm194 = vcmp.lt.s32.totalorder %v193, 8
    %vm195 = vcmp.lt.s32.totalorder %v193, 10
    %v196 = vsel %vm195, 5.0, 0.0
    %v197 = vsel %vm194, 1.0, %v196
    %v198 = vsub.f32 %v82, %v86
    %v199 = vsub.f32 %v83, %v87
    %v200 = vsub.f32 %v84, %v88
    %v201 = vsub.f32 %v85, %v89
    %v202 = vmul.f32 %v198, %v198
    %v203 = vmul.f32 %v199, %v199
    %v204 = vmul.f32 %v200, %v200
    %v205 = vmul.f32 %v201, %v201
    %v206 = vmul.f32 %v202, %v197
    %v207 = vmul.f32 %v203, %v197
    %v208 = vmul.f32 %v204, %v197
    %v209 = vmul.f32 %v205, %v197
    %v210 = vsel %vm188, 1, 0
    %v211 = vsel %vm189, 1, 0
    %v212 = vsel %vm190, 1, 0
    %v213 = vsel %vm191, 1, 0
    %214 = vset.pattern.permute.xlu0 12
    %215 = vperm.xlu0 %214, %v210
    %v216 = vpop.permute.xlu0 %215
    %217 = vset.pattern.permute.xlu0 12
    %218 = vperm.xlu0 %217, %v211
    %v219 = vpop.permute.xlu0 %218
    %220 = vset.pattern.permute.xlu0 12
    %221 = vperm.xlu0 %220, %v212
    %v222 = vpop.permute.xlu0 %221
    %223 = vset.pattern.permute.xlu0 12
    %224 = vperm.xlu0 %223, %v213
    %v225 = vpop.permute.xlu0 %224
    %vm226 = vcmp.eq.s32.totalorder %v216, 1
    %vm227 = vcmp.eq.s32.totalorder %v219, 1
    %vm228 = vcmp.eq.s32.totalorder %v222, 1
    %vm229 = vcmp.eq.s32.totalorder %v225, 1
    %v230 = vsel %vm226, %v206, 0.0
    %v231 = vsel %vm227, %v207, 0.0
    %v232 = vsel %vm228, %v208, 0.0
    %v233 = vsel %vm229, %v209, 0.0
    %vm234 = vcmask 146432
    %v235 = vsel %vm234, %v230, 0.0
    %v236 = vsel %vm234, %v231, 0.0
    %v237 = vadd.f32 %v235, %v236
    %v238 = vsel %vm234, %v232, 0.0
    %v239 = vadd.f32 %v237, %v238
    %v240 = vsel %vm234, %v233, 0.0
    %v241 = vadd.f32 %v239, %v240
    %242 = vadd.xlane.f32.xlu0 %v241
    %v243 = vpop.xlane.xlu0 %242
    %v244 = vrot.slane %v243, 4
    %v245 = vadd.f32 %v243, %v244
    %v246 = vrot.slane %v245, 2
    %v247 = vadd.f32 %v245, %v246
    %v248 = vrot.slane %v247, 1
    %v249 = vadd.f32 %v247, %v248
    %s250 = vtos %v249
    %v251 = vsub.f32 %v122, %v170
    %v252 = vmul.f32 %v251, %v251
    %v253 = vsel %vm187, %v252, 0.0
    %v255 = vrot.slane %v253, 4
    %vm257 = vcmask 253952
    %v258 = vsel %vm257, %v255, 0.0
    %259 = vadd.xlane.f32.xlu0 %v258
    %v260 = vpop.xlane.xlu0 %259
    %v261 = vrot.slane %v260, 4
    %v262 = vadd.f32 %v260, %v261
    %v263 = vrot.slane %v262, 2
    %v264 = vadd.f32 %v262, %v263
    %v265 = vrot.slane %v264, 1
    %v266 = vadd.f32 %v264, %v265
    %s267 = vtos %v266
    %v268 = vmul.f32 %v122, 0.5
    %v270 = vrot.slane %v268, 2
    %v272 = vsub.f32 %v122, %v270
    %v273 = vadd.f32 %v122, %v270
    %v274 = vmul.f32 %v170, 0.5
    %v276 = vrot.slane %v274, 2
    %v278 = vsub.f32 %v170, %v276
    %v279 = vadd.f32 %v170, %v276
    %v280 = vmin.f32 %v273, %v279
    %v281 = vmax.f32 %v272, %v278
    %v282 = vsub.f32 %v280, %v281
    %v283 = vmax.f32 %v282, 0.0
    %v285 = vrot.slane %v283, 1
    %v287 = vmul.f32 %v283, %v285
    %v289 = vrot.slane %v122, 1
    %v291 = vmul.f32 %v122, %v289
    %v293 = vrot.slane %v170, 1
    %v295 = vmul.f32 %v170, %v293
    %v296 = vadd.f32 %v291, %v295
    %v298 = vrot.slane %v287, 6
    %v300 = vsub.f32 %v296, %v298
    %v301 = vadd.f32 %v300, 1e-06
    %v302 = vrcp.pop %v301
    %v304 = vrot.slane %v302, 2
    %v306 = vmul.f32 %v287, %v304
    %v308 = vrot.slane %v306, 4
    %v310 = vsub.f32 %v122, %v308
    %v311 = vmul.f32 %v310, %v310
    %v312 = vsel %vm186, %v311, 0.0
    %v314 = vrot.slane %v312, 4
    %v316 = vsel %vm257, %v314, 0.0
    %317 = vadd.xlane.f32.xlu0 %v316
    %v318 = vpop.xlane.xlu0 %317
    %v319 = vrot.slane %v318, 4
    %v320 = vadd.f32 %v318, %v319
    %v321 = vrot.slane %v320, 2
    %v322 = vadd.f32 %v320, %v321
    %v323 = vrot.slane %v322, 1
    %v324 = vadd.f32 %v322, %v323
    %s325 = vtos %v324
    %v326 = vmax.f32 %v122, 1e-06
    %v327 = vrsqrt.pop %v326
    %v328 = vmul.f32 %v326, %v327
    %vm329 = vcmp.eq.f32.partialorder %v326, inf
    %v330 = vsel %vm329, %v326, %v328
    %vm331 = vcmp.eq.f32.partialorder %v326, 0.0
    %v332 = vand.u32 %v326, 2147483648
    %v333 = vsel %vm331, %v332, %v330
    %v334 = vmax.f32 %v170, 1e-06
    %v335 = vrsqrt.pop %v334
    %v336 = vmul.f32 %v334, %v335
    %vm337 = vcmp.eq.f32.partialorder %v334, inf
    %v338 = vsel %vm337, %v334, %v336
    %vm339 = vcmp.eq.f32.partialorder %v334, 0.0
    %v340 = vand.u32 %v334, 2147483648
    %v341 = vsel %vm339, %v340, %v338
    %v342 = vsub.f32 %v333, %v341
    %v343 = vmul.f32 %v342, %v342
    %v344 = vsel %vm186, 1, 0
    %v345 = vlaneseq
    %v346 = vshrl.u32 %v345, 7
    %v347 = vsub.s32 4, %v346
    %v348 = vrot.slane %v344, %v347
    %vm349 = vcmp.eq.s32.totalorder %v348, 1
    %v350 = vsel %vm349, %v343, 0.0
    %v352 = vrot.slane %v350, 2
    %vm354 = vcmask 254976
    %v355 = vsel %vm354, %v352, 0.0
    %356 = vadd.xlane.f32.xlu0 %v355
    %v357 = vpop.xlane.xlu0 %356
    %v358 = vrot.slane %v357, 4
    %v359 = vadd.f32 %v357, %v358
    %v360 = vrot.slane %v359, 2
    %v361 = vadd.f32 %v359, %v360
    %v362 = vrot.slane %v361, 1
    %v363 = vadd.f32 %v361, %v362
    %s364 = vtos %v363
    %s365 = sadd.f32 %s250, %s325
    %s366 = smul.f32 %s364, 5.0
    %s367 = sadd.f32 %s365, %s366
    %s368 = smul.f32 %s267, 0.5
    %s369 = sadd.f32 %s367, %s368
    %v370 = vld [vmem:[#allocation2] sm:$0x1]
    %v371 = vstv %s369
    %v372 = vadd.f32 %v370, %v371
    %vm373 = vcmask 0
    %374 = vst.msk [vmem:[#allocation2] sm:$0x1] %vm373, %v372
    // Predicated region
    $region14: #{tpu_custom_call.1} parent=1 // pred_check
      _
    $region15: #{tpu_custom_call.1} parent=1 // pred_check_branch
      %376 = sbr.rel (0) target = $region17
    $region16: #{tpu_custom_call.1} parent=1 // pred_region
      %s378 = ssub.s32 16, 16
      %379 = vsyncadd [#allocation3], %s378
      %s381 = sshll.u32 [#allocation2], 4
      %s382 = int_to_ptr.vmem [resolvable:$true] %s381
      %384 = dma.vmem_to_hbm [thread:$0]  %s382, 16, %s2, [#allocation3]
    $region17: #{tpu_custom_call.1} parent=1 // pred_fallthru
      _
    // Predicated region
    $region18: #{tpu_custom_call.1} parent=1 // pred_check
      _
    $region19: #{tpu_custom_call.1} parent=1 // pred_check_branch
      %386 = sbr.rel (0) target = $region21
    $region20: #{tpu_custom_call.1} parent=1 // pred_region
      %387 = dma.done [#allocation3], 16
    $region21: #{tpu_custom_call.1} parent=1 // pred_fallthru
      _
    %388 = vsyncpa [#allocation3], 1

</llo_original>
